<compile_context>
chip_gen: v5e
topology: v5e:2x2
jax: 0.10.0
libtpu: 0.0.40
codegen_flags: <defaults>
</compile_context>

<pallas_src>
import jax
import jax.numpy as jnp
from jax import lax
from jax.experimental import pallas as pl
from jax.experimental.pallas import tpu as pltpu

SIGMAS = 2  # class attribute Show.sigmas


def _normalize(x, n):
    """Shared math: x is an f32 tile, stats taken over the last axis group
    already reduced into s/ss below by the callers."""
    raise NotImplementedError  # not used; kept kernels explicit below


def _show_kernel_rows(x_ref, img_ref):
    # x_ref block: (tile_rows, H*W) in the input's native dtype
    # img_ref block: (tile_rows, H*W) uint8
    x = x_ref[...].astype(jnp.float32)
    n = x.shape[-1]
    # One-pass stats: two independent reductions over the lane axis.
    s = jnp.sum(x, axis=-1, keepdims=True)
    ss = jnp.sum(x * x, axis=-1, keepdims=True)
    mean = s * (1.0 / n)
    # torch.std defaults to unbiased (ddof=1); n==1 -> 0/0 -> NaN, matching torch.
    var = (ss - s * mean) / jnp.float32(n - 1)
    var = jnp.maximum(var, 0.0)  # guard tiny negative from cancellation
    # 1 / clamp(sqrt(var) * (SIGMAS/128), 1e-5)  ==  min(rsqrt(var) * 128/SIGMAS, 1e5)
    inv_scale = jnp.minimum(lax.rsqrt(var) * (128.0 / SIGMAS), 1e5)
    q = jnp.clip((x - mean) * inv_scale + 128.0, 0.0, 255.0)
    # .byte(): truncation toward zero; values are in [0, 255] so a direct
    # f32 -> u8 cast preserves it (no i32 temp).
    img_ref[...] = q.astype(jnp.uint8)


def _show_kernel_fused(x_ref, img_ref):
    # Fused display-layout path: one (b, c) image per grid step.
    # x_ref block: (1, 1, H, W) native dtype; img_ref block: (H, W) uint8
    # written directly at (b*H, c*W) of the (B*H, C*W) display image.
    x = x_ref[0, 0].astype(jnp.float32)
    h, w = x.shape
    n = h * w
    s = jnp.sum(x, axis=(0, 1), keepdims=True)
    ss = jnp.sum(x * x, axis=(0, 1), keepdims=True)
    mean = s * (1.0 / n)
    var = (ss - s * mean) / jnp.float32(n - 1)
    var = jnp.maximum(var, 0.0)
    inv_scale = jnp.minimum(lax.rsqrt(var) * (128.0 / SIGMAS), 1e5)
    q = jnp.clip((x - mean) * inv_scale + 128.0, 0.0, 255.0)
    img_ref[...] = q.astype(jnp.uint8)


def _vmem_config():
    """(block_budget_bytes, vmem_limit_bytes, force_two_grid_steps)."""
    cap = None
    try:
        cap = int(pltpu.get_tpu_info().vmem_capacity_bytes)
    except Exception:
        cap = None
    if cap is None or cap <= 64 * 1024 * 1024:
        # v7x-class (64 MiB per TC) or unknown: conservative budget, and split
        # the row grid into >=2 steps so both TensorCores get work.
        return 20 * 1024 * 1024, 48 * 1024 * 1024, True
    # 128 MiB parts (v5e / v6e): spend the headroom on bigger blocks.
    return 56 * 1024 * 1024, 96 * 1024 * 1024, False


# Per-element VMEM cost of one tile: double-buffered input + uint8 output
# blocks, plus ~4 tile-sized single-buffered f32 temporaries inside the kernel
# (f32 upcast, x*x, centered, scaled/clipped).
def _per_elem_bytes(in_itemsize):
    return 2 * (in_itemsize + 1) + 4 * 4


def _pick_tile_rows(rows, cols, in_itemsize, block_budget, two_core_split):
    """Largest 32-aligned row tile whose blocks + temps fit the budget."""
    per_row = cols * _per_elem_bytes(in_itemsize)
    tile_rows = max(8, block_budget // max(per_row, 1))
    if two_core_split and rows >= 64:
        # Guarantee >= 2 grid steps so "parallel" shards across v7x's 2 TCs.
        half = -(-rows // 2)
        half = ((half + 31) // 32) * 32
        tile_rows = min(tile_rows, half)
    if tile_rows < rows:
        # Multiple of 32 keeps both the f32 input (8-sublane) and uint8
        # output (32-sublane packing) tiles aligned -> unmasked vst.
        tile_rows = max(8, (tile_rows // 32) * 32)
    return min(tile_rows, rows)


def show_forward(x, colored=False):
    """Reproduces Show.forward: returns `inputs` unchanged plus the uint8
    visualization image that the module would pass to cv2.imshow."""
    bs, ch, h, w = x.shape
    cols = h * w
    block_budget, vmem_limit, two_core = _vmem_config()

    # Fused display-layout path: writes the transposed (B*H, C*W) uint8 image
    # directly from the kernel, removing the post-kernel transpose HBM pass.
    fused_block_bytes = cols * _per_elem_bytes(x.dtype.itemsize)
    use_fused = (
        (not colored)
        and (w % 128 == 0)          # lane-dense, unmasked stores
        and (h % 8 == 0)            # sublane-aligned blocks
        and fused_block_bytes <= block_budget
    )

    if use_fused:
        image = pl.pallas_call(
            _show_kernel_fused,
            out_shape=jax.ShapeDtypeStruct((bs * h, ch * w), jnp.uint8),
            grid_spec=pltpu.PrefetchScalarGridSpec(
                num_scalar_prefetch=0,
                grid=(bs, ch),
                in_specs=[pl.BlockSpec((1, 1, h, w), lambda b, c: (b, c, 0, 0))],
                out_specs=pl.BlockSpec((h, w), lambda b, c: (b, c)),
            ),
            compiler_params=pltpu.CompilerParams(
                dimension_semantics=("parallel", "parallel"),
                vmem_limit_bytes=vmem_limit,
            ),
        )(x)
        # TODO(synk): cv2.imshow / cv2.waitKey / cv2.destroyWindow are host-side
        # display side effects with no Pallas/JAX equivalent; image is returned.
        return x, image

    # Flat row-streaming path (any shape); lane axis = H*W.
    # (If H*W is not a multiple of 128 the uint8 stores are masked; correct,
    # just less lane-dense.)
    rows = bs * ch
    x2 = x.reshape(rows, cols)  # keep native dtype; cast happens in-kernel
    tile_rows = _pick_tile_rows(rows, cols, x2.dtype.itemsize, block_budget, two_core)
    grid = (pl.cdiv(rows, tile_rows),)

    img_flat = pl.pallas_call(
        _show_kernel_rows,
        out_shape=jax.ShapeDtypeStruct((rows, cols), jnp.uint8),
        grid_spec=pltpu.PrefetchScalarGridSpec(
            num_scalar_prefetch=0,
            grid=grid,
            in_specs=[pl.BlockSpec((tile_rows, cols), lambda i: (i, 0))],
            out_specs=pl.BlockSpec((tile_rows, cols), lambda i: (i, 0)),
        ),
        compiler_params=pltpu.CompilerParams(
            dimension_semantics=("parallel",),
            vmem_limit_bytes=vmem_limit,
        ),
    )(x2)

    image = img_flat.reshape(bs, ch, h, w)
    if colored:
        groups = ch // 3
        image = image[:, : groups * 3, :, :].reshape(bs, groups, 3, h, w)
        image = jnp.transpose(image, (0, 3, 1, 4, 2)).reshape(bs * h, -1, 3)
    else:
        image = jnp.transpose(image, (0, 2, 1, 3)).reshape(bs * h, -1)

    # TODO(synk): cv2.imshow / cv2.waitKey / cv2.destroyWindow are host-side
    # display side effects with no Pallas/JAX equivalent; image is returned.
    return x, image


def _reference_image(x):
    """Pure-JAX reference following the torch formula exactly."""
    xf = x.astype(jnp.float32)
    bias = xf.mean(axis=(-2, -1), keepdims=True)
    std = jnp.std(xf, axis=(-2, -1), keepdims=True, ddof=1)
    scale = 1.0 / jnp.maximum(std * (SIGMAS / 128.0), 1e-5)
    ten = jnp.clip((xf - bias) * scale + 128.0, 0.0, 255.0)
    return ten.astype(jnp.uint8)


if __name__ == "__main__":
    key = jax.random.PRNGKey(0)

    # --- Non-colored, non-128-aligned spatial -> flat row-streaming path ---
    x = jax.random.normal(key, (2, 4, 16, 16), dtype=jnp.float32)
    out, image = show_forward(x, colored=False)
    out = jax.block_until_ready(out)
    image = jax.block_until_ready(image)

    assert out.shape == (2, 4, 16, 16)
    assert jnp.array_equal(out, x)
    assert image.shape == (2 * 16, 4 * 16)
    assert image.dtype == jnp.uint8

    ref = _reference_image(x)
    ref_image = jnp.transpose(ref, (0, 2, 1, 3)).reshape(2 * 16, -1)
    diff = jnp.abs(image.astype(jnp.int32) - ref_image.astype(jnp.int32))
    # rsqrt / one-pass variance may differ from sqrt+divide by <=1 uint8 LSB
    assert int(diff.max()) <= 1, f"max diff {int(diff.max())}"

    # --- Non-colored, 128-aligned spatial -> fused display-layout path ---
    xf = jax.random.normal(jax.random.PRNGKey(2), (2, 4, 32, 128), dtype=jnp.float32)
    out_f, image_f = show_forward(xf, colored=False)
    image_f = jax.block_until_ready(image_f)
    assert jnp.array_equal(out_f, xf)
    assert image_f.shape == (2 * 32, 4 * 128)
    assert image_f.dtype == jnp.uint8
    ref_f = _reference_image(xf)
    ref_f_image = jnp.transpose(ref_f, (0, 2, 1, 3)).reshape(2 * 32, -1)
    diff_f = jnp.abs(image_f.astype(jnp.int32) - ref_f_image.astype(jnp.int32))
    assert int(diff_f.max()) <= 1, f"fused max diff {int(diff_f.max())}"

    # --- Colored path (6 channels -> 2 RGB groups) ---
    xc = jax.random.normal(jax.random.PRNGKey(1), (2, 6, 16, 16), dtype=jnp.float32)
    out_c, image_c = show_forward(xc, colored=True)
    image_c = jax.block_until_ready(image_c)
    assert jnp.array_equal(out_c, xc)
    assert image_c.shape == (2 * 16, 2 * 16, 3)
    assert image_c.dtype == jnp.uint8
    ref_c = _reference_image(xc)
    ref_c_img = ref_c[:, :6, :, :].reshape(2, 2, 3, 16, 16)
    ref_c_img = jnp.transpose(ref_c_img, (0, 3, 1, 4, 2)).reshape(2 * 16, -1, 3)
    diff_c = jnp.abs(image_c.astype(jnp.int32) - ref_c_img.astype(jnp.int32))
    assert int(diff_c.max()) <= 1, f"colored max diff {int(diff_c.max())}"

    print("KERNEL_OK")
</pallas_src>

<mosaic_0001>
module attributes {stable_mosaic.version = 11 : i64} {
  func.func @_show_kernel_rows(%arg0: i32, %arg1: memref<8x256xf32, #tpu.memory_space<vmem>>, %arg2: memref<8x256xi8, #tpu.memory_space<vmem>>) attributes {dimension_semantics = [#tpu.dimension_semantics<parallel>], iteration_bounds = array<i64: 1>, scalar_prefetch = 0 : i64, scratch_operands = 0 : i64, tpu.core_type = #tpu.core_type<tc>, window_params = [{transform_indices = @transform_0, window_bounds = array<i64: 8, 256>}, {transform_indices = @transform_1, window_bounds = array<i64: 8, 256>}]} {
    %c0 = arith.constant 0 : index
    %c0_0 = arith.constant 0 : index
    %0 = vector.load %arg1[%c0, %c0_0] : memref<8x256xf32, #tpu.memory_space<vmem>>, vector<8x256xf32>
    %cst = arith.constant dense<0.000000e+00> : vector<8xf32>
    %1 = vector.multi_reduction <add>, %0, %cst [1] : vector<8x256xf32> to vector<8xf32>
    %2 = vector.shape_cast %1 : vector<8xf32> to vector<8x1xf32>
    %3 = arith.mulf %0, %0 : vector<8x256xf32>
    %cst_1 = arith.constant dense<0.000000e+00> : vector<8xf32>
    %4 = vector.multi_reduction <add>, %3, %cst_1 [1] : vector<8x256xf32> to vector<8xf32>
    %5 = vector.shape_cast %4 : vector<8xf32> to vector<8x1xf32>
    %cst_2 = arith.constant 3.906250e-03 : f32
    %6 = vector.broadcast %cst_2 : f32 to vector<8x1xf32>
    %7 = arith.mulf %2, %6 : vector<8x1xf32>
    %8 = arith.mulf %2, %7 : vector<8x1xf32>
    %9 = arith.subf %5, %8 : vector<8x1xf32>
    %cst_3 = arith.constant 2.550000e+02 : f32
    %10 = vector.broadcast %cst_3 : f32 to vector<8x1xf32>
    %11 = arith.divf %9, %10 : vector<8x1xf32>
    %cst_4 = arith.constant 0.000000e+00 : f32
    %12 = vector.broadcast %cst_4 : f32 to vector<8x1xf32>
    %13 = arith.maximumf %11, %12 : vector<8x1xf32>
    %14 = math.rsqrt %13 : vector<8x1xf32>
    %cst_5 = arith.constant 6.400000e+01 : f32
    %15 = vector.broadcast %cst_5 : f32 to vector<8x1xf32>
    %16 = arith.mulf %14, %15 : vector<8x1xf32>
    %cst_6 = arith.constant 1.000000e+05 : f32
    %17 = vector.broadcast %cst_6 : f32 to vector<8x1xf32>
    %18 = arith.minimumf %16, %17 : vector<8x1xf32>
    %19 = vector.broadcast %7 : vector<8x1xf32> to vector<8x256xf32>
    %20 = arith.subf %0, %19 : vector<8x256xf32>
    %21 = vector.broadcast %18 : vector<8x1xf32> to vector<8x256xf32>
    %22 = arith.mulf %20, %21 : vector<8x256xf32>
    %cst_7 = arith.constant 1.280000e+02 : f32
    %23 = vector.broadcast %cst_7 : f32 to vector<8x256xf32>
    %24 = arith.addf %22, %23 : vector<8x256xf32>
    %cst_8 = arith.constant 0.000000e+00 : f32
    %cst_9 = arith.constant 2.550000e+02 : f32
    %25 = vector.broadcast %cst_8 : f32 to vector<8x256xf32>
    %26 = arith.maximumf %25, %24 : vector<8x256xf32>
    %27 = vector.broadcast %cst_9 : f32 to vector<8x256xf32>
    %28 = arith.minimumf %27, %26 : vector<8x256xf32>
    %29 = arith.fptoui %28 : vector<8x256xf32> to vector<8x256xi8>
    %c0_10 = arith.constant 0 : index
    %c0_11 = arith.constant 0 : index
    %30 = vector.load %arg2[%c0_10, %c0_11] : memref<8x256xi8, #tpu.memory_space<vmem>>, vector<8x256xi8>
    tpu.vector_store %arg2[%c0_10, %c0_11], %29 {strides = array<i32>} : memref<8x256xi8, #tpu.memory_space<vmem>>, vector<8x256xi8>,
    return
  }
  func.func @transform_0(%arg0: i32) -> (i32, i32) {
    %c0_i32 = arith.constant 0 : i32
    %c0_i32_0 = arith.constant 0 : i32
    return %arg0, %c0_i32 : i32, i32
  }
  func.func @transform_1(%arg0: i32) -> (i32, i32) {
    %c0_i32 = arith.constant 0 : i32
    %c0_i32_0 = arith.constant 0 : i32
    return %arg0, %c0_i32 : i32, i32
  }
}

</mosaic_0001>

<llo_original>
// kernel: tpu_custom_call.1
$region0: #{tpu_custom_call.1}
  #allocation0 [shape = 'u32[]', space=smem, size = 0x4, offset = 0x4, fixed_abs, tag = 'smem constant byte address 0x4 - core index']
  #allocation1 [shape = 'u32[72,128]{1,0:T(1,128)}', space=vmem, size = 0x9000, scoped, tag = 'internal scratch']
  %s0 = inlined_call_operand.hbm [shape: f32[8,256], index: 0, kind: input, shape index: {}]
  %s1 = inlined_call_operand.hbm [shape: u8[8,256], index: 1, kind: output, shape index: {}]
  %s2 = sld [smem:[#allocation0]]
  $region18: #{tpu_custom_call.1} parent=0
    _
  %s4 = ssub.s32 1, %s2
  %s5 = scalar_select 0, %s4, %s2
  $region1: #{tpu_custom_call.1} parent=0
    #allocation2 [shape = 'u8[8192]{0}', space=vmem, size = 0x2000, scoped, tag = 'input window, operand 0, single buffered']
    #allocation3 [shape = 's32[1]{0}', space=sflag, size = 0x4, scoped, tag = 'scoped memory for tpu_custom_call.1']
    #allocation4 [shape = 's32[1]{0}', space=sflag, size = 0x4, scoped, tag = 'scoped memory for tpu_custom_call.1']
    #allocation5 [shape = 'u8[2048]{0}', space=vmem, size = 0x800, scoped, tag = 'output window, operand 0, single buffered']
    %6 = vsyncpa [#allocation3], 0
    %7 = vsyncpa [#allocation4], 0
    // Predicated region
    $region2: #{tpu_custom_call.1} parent=1 // pred_check
      _
    $region3: #{tpu_custom_call.1} parent=1 // pred_check_branch
      %9 = sbr.rel (0) target = $region5
    $region4: #{tpu_custom_call.1} parent=1 // pred_region
      %11 = vsyncadd [#allocation3], 0
      %s13 = sshll.u32 %s0, 4
      %s14 = int_to_ptr.hbm [resolvable:$true] %s13
      %s15 = sshll.u32 [#allocation2], 4
      %s16 = int_to_ptr.vmem [resolvable:$true] %s15
      %18 = dma.hbm_to_vmem [thread:$0]  %s14, 256, %s16, [#allocation3]
    $region5: #{tpu_custom_call.1} parent=1 // pred_fallthru
      _
    // Predicated region
    $region6: #{tpu_custom_call.1} parent=1 // pred_check
      _
    $region7: #{tpu_custom_call.1} parent=1 // pred_check_branch
      %20 = sbr.rel (0) target = $region9
    $region8: #{tpu_custom_call.1} parent=1 // pred_region
      %22 = dma.done [#allocation3], 256
    $region9: #{tpu_custom_call.1} parent=1 // pred_fallthru
      _
    %v23 = vld [vmem:[#allocation2] sm:$0xff]
    %v24 = vld [vmem:[#allocation2 + $0x8] sm:$0xff]
    %v25 = vadd.f32 %v23, %v24
    %26 = vadd.xlane.f32.xlu0 %v25
    %v27 = vpop.xlane.xlu0 %26
    %v28 = vmul.f32 %v23, %v23
    %v29 = vmul.f32 %v24, %v24
    %v30 = vadd.f32 %v28, %v29
    %31 = vadd.xlane.f32.xlu0 %v30
    %v32 = vpop.xlane.xlu0 %31
    %v33 = vmul.f32 %v27, 0.00390625
    %v34 = vmul.f32 %v27, %v33
    %v35 = vsub.f32 %v32, %v34
    %v36 = vrcp.pop 255.0
    %v37 = vmul.f32 255.0, %v36
    %v38 = vsub.f32 1.0, %v37
    %v39 = vmul.f32 %v36, %v38
    %v40 = vadd.f32 %v36, %v39
    %vm41 = vweird.f32 %v36
    %v42 = vsel %vm41, %v36, %v40
    %v43 = vmul.f32 %v35, %v42
    %v44 = vmax.f32 %v43, 0.0
    %v45 = vrsqrt.pop %v44
    %v46 = vmul.f32 %v45, %v44
    %v47 = vmul.f32 %v46, %v45
    %v48 = vmul.f32 0.5, %v47
    %v49 = vsub.f32 1.5, %v48
    %v50 = vmul.f32 %v45, %v49
    %vm51 = vweird.f32 %v44
    %vm52 = vweird.f32 %v45
    %vm53 = vmor %vm51, %vm52
    %v54 = vsel %vm53, %v45, %v50
    %v55 = vmul.f32 %v54, 64.0
    %v56 = vmin.f32 %v55, 100000.0
    %v57 = vsub.f32 %v23, %v33
    %v58 = vsub.f32 %v24, %v33
    %v59 = vmul.f32 %v57, %v56
    %v60 = vmul.f32 %v58, %v56
    %v61 = vadd.f32 %v59, 128.0
    %v62 = vadd.f32 %v60, 128.0
    %v63 = vmax.f32 %v61, 0.0
    %v64 = vmax.f32 %v62, 0.0
    %v65 = vmin.f32 %v63, 255.0
    %v66 = vmin.f32 %v64, 255.0
    %v67 = vmax.f32 %v65, 0.0
    %v68 = vmax.f32 %v66, 0.0
    %v69 = vmin.f32 %v67, 255.0
    %v70 = vmin.f32 %v68, 255.0
    %v71 = vcvt.f32.s32.to.zero.pseudo %v69
    %v72 = vcvt.f32.s32.to.zero.pseudo %v70
    %v73 = vpack.c.b16 %v72, %v71
    %v74 = vpack.c.b8 %v73, %v73
    %75 = vst [vmem:[#allocation5] sm:$0xf] %v74
    // Predicated region
    $region10: #{tpu_custom_call.1} parent=1 // pred_check
      _
    $region11: #{tpu_custom_call.1} parent=1 // pred_check_branch
      %77 = sbr.rel (0) target = $region13
    $region12: #{tpu_custom_call.1} parent=1 // pred_region
      %79 = vsyncadd [#allocation4], 0
      %s81 = sshll.u32 [#allocation5], 4
      %s82 = int_to_ptr.vmem [resolvable:$true] %s81
      %s83 = sshll.u32 %s1, 4
      %s84 = int_to_ptr.hbm [resolvable:$true] %s83
      %86 = dma.vmem_to_hbm [thread:$0]  %s82, 64, %s84, [#allocation4]
    $region13: #{tpu_custom_call.1} parent=1 // pred_fallthru
      _
    // Predicated region
    $region14: #{tpu_custom_call.1} parent=1 // pred_check
      _
    $region15: #{tpu_custom_call.1} parent=1 // pred_check_branch
      %88 = sbr.rel (0) target = $region17
    $region16: #{tpu_custom_call.1} parent=1 // pred_region
      %90 = dma.done [#allocation4], 64
    $region17: #{tpu_custom_call.1} parent=1 // pred_fallthru
      _
    %91 = vsyncpa [#allocation3], 1
    %92 = vsyncpa [#allocation4], 1

</llo_original>
